<compile_context>
chip_gen: v5e
topology: v5e:2x2
jax: 0.10.0
libtpu: 0.0.40
codegen_flags: <defaults>
</compile_context>

<pallas_src>
import math

import jax
import jax.numpy as jnp
from jax.experimental import pallas as pl
from jax.experimental.pallas import tpu as pltpu

_MIB = 1024 * 1024


def _vmem_capacity_bytes():
    """Physical VMEM of the current TPU generation (fallback: 64 MiB, the
    most restrictive of v5e/v6e/v7x, so the fallback is always safe)."""
    try:
        info = pltpu.get_tpu_info()
        cap = getattr(info, "vmem_capacity_bytes", None)
        if cap:
            return int(cap)
    except Exception:
        pass
    return 64 * _MIB


def _sublane_pack(dtype):
    # Sub-32-bit dtypes pack along sublanes: 8 rows/vreg for 32-bit,
    # 16 for bf16/fp16, 32 for int8/fp8.
    itemsize = jnp.dtype(dtype).itemsize
    return (8 * 4) // itemsize


def _choose_tiling(total, dtype):
    """Pick a lane-dense (rows, lanes) slab plus a row tile, or None if the
    element count cannot form one (the caller then skips the kernel)."""
    itemsize = jnp.dtype(dtype).itemsize
    sublane = _sublane_pack(dtype)

    # Widest lane dimension first: fewer/longer DMA rows, unmasked full-width
    # stores.  Require rows to stay a multiple of the sublane pack.
    lanes = None
    for cand in (4096, 2048, 1024, 512, 256, 128):
        if total % (cand * sublane) == 0:
            lanes = cand
            break
    if lanes is None:
        return None
    rows = total // lanes

    vmem = _vmem_capacity_bytes()
    big_vmem = vmem >= 100 * _MIB          # v5e/v6e: 128 MiB; v7x: 64 MiB
    block_cap = (8 if big_vmem else 4) * _MIB   # 4x (2 in + 2 out bufs) <= 32/16 MiB
    vmem_limit = (64 if big_vmem else 32) * _MIB

    # Largest sublane*2^k divisor of `rows` whose block stays under the cap.
    row_tile = sublane
    while True:
        nxt = row_tile * 2
        if (nxt <= rows and rows % nxt == 0
                and nxt * lanes * itemsize <= block_cap):
            row_tile = nxt
        else:
            break

    # Avoid a degenerate grid of 1 when the array can be split: on v7x both
    # TensorCores then drive HBM (on v5e/v6e this is a measured no-op).
    half = rows // 2
    if row_tile == rows and half >= sublane and half % sublane == 0:
        row_tile = half

    return rows, lanes, row_tile, vmem_limit


def _make_lambda_kernel(elementwise):
    def kernel(x_ref, o_ref):
        v = x_ref[...]
        if elementwise is not None:
            v = elementwise(v)
        o_ref[...] = v
    return kernel


def lambda_flatten(x, *, elementwise=None, force_kernel=False):
    """Equivalent of Lambda(lambda x: x.view(x.size(0), -1)) for NCHW input.

    Default path: metadata-only reshape, no kernel, no HBM traffic.
    If `elementwise` work is fused (or `force_kernel=True` for testing), a
    lane-dense, pipelined Pallas kernel applies it tile-by-tile.
    """
    b = x.shape[0]
    feat = math.prod(x.shape[1:])
    out_shape = (b, feat)

    if elementwise is None and not force_kernel:
        return x.reshape(out_shape)        # pure view: the optimal answer

    total = b * feat
    tiling = _choose_tiling(total, x.dtype)
    if tiling is None:
        # Cannot form a lane-dense slab; never emit an oversized full-extent
        # block — fall back to plain XLA (exact semantics, no VMEM risk).
        y = x.reshape(out_shape)
        return elementwise(y) if elementwise is not None else y

    rows, lanes, row_tile, vmem_limit = tiling
    itemsize = jnp.dtype(x.dtype).itemsize
    slab = x.reshape(rows, lanes)          # wrapper-side reshape: metadata only

    out = pl.pallas_call(
        _make_lambda_kernel(elementwise),
        out_shape=jax.ShapeDtypeStruct((rows, lanes), x.dtype),
        grid=(rows // row_tile,),
        in_specs=[pl.BlockSpec((row_tile, lanes), lambda i: (i, 0))],
        out_specs=pl.BlockSpec((row_tile, lanes), lambda i: (i, 0)),
        # NOTE: no input_output_aliases — the slab is a view of `x` which
        # stays live, so donation would just force a defensive copy.
        compiler_params=pltpu.CompilerParams(
            dimension_semantics=("parallel",),
            vmem_limit_bytes=vmem_limit,
        ),
        cost_estimate=pl.CostEstimate(
            flops=0,
            transcendentals=0,
            bytes_accessed=2 * total * itemsize,
        ),
    )(slab)

    return out.reshape(out_shape)          # metadata-only reshape to (B, C*H*W)


if __name__ == "__main__":
    key = jax.random.PRNGKey(0)
    # Small NCHW input consistent with how Lambda is fed in the tutorial.
    x = jax.random.normal(key, (2, 4, 16, 16), dtype=jnp.float32)
    ref = x.reshape(x.shape[0], -1)

    # Default path: no kernel at all (the optimal implementation of Lambda's
    # reshape), still checked for correctness.
    y_fast = lambda_flatten(x)
    jax.block_until_ready(y_fast)
    assert y_fast.shape == (2, 4 * 16 * 16), y_fast.shape
    assert jnp.array_equal(y_fast, ref), "mismatch vs reference flatten (view path)"

    # Kernel path: exercise the Pallas fusion point once (identity elementwise).
    y_kernel = lambda_flatten(x, force_kernel=True)
    jax.block_until_ready(y_kernel)
    assert y_kernel.shape == (2, 4 * 16 * 16), y_kernel.shape
    assert y_kernel.dtype == x.dtype
    assert jnp.array_equal(y_kernel, ref), "mismatch vs reference flatten (kernel path)"

    print("KERNEL_OK")
</pallas_src>

<mosaic_0001>
module attributes {stable_mosaic.version = 11 : i64} {
  func.func @kernel(%arg0: i32, %arg1: memref<8x256xf32, #tpu.memory_space<vmem>>, %arg2: memref<8x256xf32, #tpu.memory_space<vmem>>) attributes {dimension_semantics = [#tpu.dimension_semantics<parallel>], iteration_bounds = array<i64: 1>, scalar_prefetch = 0 : i64, scratch_operands = 0 : i64, tpu.core_type = #tpu.core_type<tc>, window_params = [{transform_indices = @transform_0, window_bounds = array<i64: 8, 256>}, {transform_indices = @transform_1, window_bounds = array<i64: 8, 256>}]} {
    %c0 = arith.constant 0 : index
    %c0_0 = arith.constant 0 : index
    %0 = vector.load %arg1[%c0, %c0_0] : memref<8x256xf32, #tpu.memory_space<vmem>>, vector<8x256xf32>
    %c0_1 = arith.constant 0 : index
    %c0_2 = arith.constant 0 : index
    %1 = vector.load %arg2[%c0_1, %c0_2] : memref<8x256xf32, #tpu.memory_space<vmem>>, vector<8x256xf32>
    tpu.vector_store %arg2[%c0_1, %c0_2], %0 {strides = array<i32>} : memref<8x256xf32, #tpu.memory_space<vmem>>, vector<8x256xf32>,
    return
  }
  func.func @transform_0(%arg0: i32) -> (i32, i32) {
    %c0_i32 = arith.constant 0 : i32
    %c0_i32_0 = arith.constant 0 : i32
    return %arg0, %c0_i32 : i32, i32
  }
  func.func @transform_1(%arg0: i32) -> (i32, i32) {
    %c0_i32 = arith.constant 0 : i32
    %c0_i32_0 = arith.constant 0 : i32
    return %arg0, %c0_i32 : i32, i32
  }
}

</mosaic_0001>

<llo_original>
// kernel: tpu_custom_call.1
$region0: #{tpu_custom_call.1}
  #allocation0 [shape = 'u32[]', space=smem, size = 0x4, offset = 0x4, fixed_abs, tag = 'smem constant byte address 0x4 - core index']
  #allocation1 [shape = 'u32[72,128]{1,0:T(1,128)}', space=vmem, size = 0x9000, scoped, tag = 'internal scratch']
  %s0 = inlined_call_operand.hbm [shape: f32[8,256], index: 0, kind: input, shape index: {}]
  %s1 = inlined_call_operand.hbm [shape: f32[8,256], index: 1, kind: output, shape index: {}]
  %s2 = sld [smem:[#allocation0]]
  $region18: #{tpu_custom_call.1} parent=0
    _
  %s4 = ssub.s32 1, %s2
  %s5 = scalar_select 0, %s4, %s2
  $region1: #{tpu_custom_call.1} parent=0
    #allocation2 [shape = 'u8[8192]{0}', space=vmem, size = 0x2000, scoped, tag = 'input window, operand 0, single buffered']
    #allocation3 [shape = 's32[1]{0}', space=sflag, size = 0x4, scoped, tag = 'scoped memory for tpu_custom_call.1']
    #allocation4 [shape = 's32[1]{0}', space=sflag, size = 0x4, scoped, tag = 'scoped memory for tpu_custom_call.1']
    #allocation5 [shape = 'u8[8192]{0}', space=vmem, size = 0x2000, scoped, tag = 'output window, operand 0, single buffered']
    %6 = vsyncpa [#allocation3], 0
    %7 = vsyncpa [#allocation4], 0
    // Predicated region
    $region2: #{tpu_custom_call.1} parent=1 // pred_check
      _
    $region3: #{tpu_custom_call.1} parent=1 // pred_check_branch
      %9 = sbr.rel (0) target = $region5
    $region4: #{tpu_custom_call.1} parent=1 // pred_region
      %11 = vsyncadd [#allocation3], 0
      %s13 = sshll.u32 %s0, 4
      %s14 = int_to_ptr.hbm [resolvable:$true] %s13
      %s15 = sshll.u32 [#allocation2], 4
      %s16 = int_to_ptr.vmem [resolvable:$true] %s15
      %18 = dma.hbm_to_vmem [thread:$0]  %s14, 256, %s16, [#allocation3]
    $region5: #{tpu_custom_call.1} parent=1 // pred_fallthru
      _
    // Predicated region
    $region6: #{tpu_custom_call.1} parent=1 // pred_check
      _
    $region7: #{tpu_custom_call.1} parent=1 // pred_check_branch
      %20 = sbr.rel (0) target = $region9
    $region8: #{tpu_custom_call.1} parent=1 // pred_region
      %22 = dma.done [#allocation3], 256
    $region9: #{tpu_custom_call.1} parent=1 // pred_fallthru
      _
    %v23 = vld [vmem:[#allocation2] sm:$0xff]
    %v24 = vld [vmem:[#allocation2 + $0x8] sm:$0xff]
    %25 = vst [vmem:[#allocation5] sm:$0xff] %v23
    %26 = vst [vmem:[#allocation5 + $0x8] sm:$0xff] %v24
    // Predicated region
    $region10: #{tpu_custom_call.1} parent=1 // pred_check
      _
    $region11: #{tpu_custom_call.1} parent=1 // pred_check_branch
      %28 = sbr.rel (0) target = $region13
    $region12: #{tpu_custom_call.1} parent=1 // pred_region
      %30 = vsyncadd [#allocation4], 0
      %s32 = sshll.u32 [#allocation5], 4
      %s33 = int_to_ptr.vmem [resolvable:$true] %s32
      %s34 = sshll.u32 %s1, 4
      %s35 = int_to_ptr.hbm [resolvable:$true] %s34
      %37 = dma.vmem_to_hbm [thread:$0]  %s33, 256, %s35, [#allocation4]
    $region13: #{tpu_custom_call.1} parent=1 // pred_fallthru
      _
    // Predicated region
    $region14: #{tpu_custom_call.1} parent=1 // pred_check
      _
    $region15: #{tpu_custom_call.1} parent=1 // pred_check_branch
      %39 = sbr.rel (0) target = $region17
    $region16: #{tpu_custom_call.1} parent=1 // pred_region
      %41 = dma.done [#allocation4], 256
    $region17: #{tpu_custom_call.1} parent=1 // pred_fallthru
      _
    %42 = vsyncpa [#allocation3], 1
    %43 = vsyncpa [#allocation4], 1

</llo_original>
